<compile_context>
chip_gen: v7x
topology: tpu7x:2x2x1
jax: 0.10.0
libtpu: 0.0.40
codegen_flags: <defaults>
</compile_context>

<pallas_src>
import math

import jax
import jax.numpy as jnp
from jax.experimental import pallas as pl
from jax.experimental.pallas import tpu as pltpu

T = 1000
_LANE = 128
_SUBLANE = 8


def _round_up(x, m):
    return ((x + m - 1) // m) * m


# -----------------------------------------------------------------------------
# Fused Pallas kernel: table-gather -> Linear -> Swish -> Linear
# -----------------------------------------------------------------------------
def _time_embedding_kernel(t_ref,            # (Bp,) int32 in SMEM (scalar prefetch)
                           table_ref,        # (T, d_model) f32 in VMEM
                           w1_ref, b1_ref,   # (d_model, dim_p), (1, dim_p)
                           w2_ref, b2_ref,   # (dim_p, dim_p), (1, dim_p)
                           o_ref,            # (TB, dim_p)
                           x_scratch):       # VMEM scratch (TB, d_model)
    i = pl.program_id(0)
    tb = x_scratch.shape[0]

    # Fused embedding gather: one dynamic row slice of the VMEM-resident table
    # per batch row.  TB is a small static tile -> short static unroll; each
    # copy is a scalar-indexed sublane slice (VMEM -> vreg -> VMEM scratch).
    for b in range(tb):
        idx = t_ref[i * tb + b]
        x_scratch[pl.ds(b, 1), :] = table_ref[pl.ds(idx, 1), :]

    x = x_scratch[...]                                              # (TB, d_model)
    h = jnp.dot(x, w1_ref[...],
                preferred_element_type=jnp.float32) + b1_ref[...]   # (TB, dim_p)
    h = h * jax.nn.sigmoid(h)                                       # Swish (EUP)
    o = jnp.dot(h, w2_ref[...],
                preferred_element_type=jnp.float32) + b2_ref[...]   # (TB, dim_p)
    o_ref[...] = o.astype(o_ref.dtype)


def time_embedding_forward(t, emb_table, params, *, max_block_b=128):
    """t: (B,) int32 timestep indices. Returns (B, dim) float32."""
    w1, b1, w2, b2 = params
    B = t.shape[0]
    T_, d_model = emb_table.shape
    dim = w1.shape[1]

    # Lane-dense feature padding (unmasked vector stores); sliced off below.
    dim_p = _round_up(max(dim, _LANE), _LANE)
    pad_n = dim_p - dim
    w1p = jnp.pad(w1, ((0, 0), (0, pad_n)))
    b1p = jnp.pad(b1, ((0, 0), (0, pad_n)))
    w2p = jnp.pad(w2, ((0, pad_n), (0, pad_n)))
    b2p = jnp.pad(b2, ((0, 0), (0, pad_n)))

    # Batch tiling: up to max_block_b rows per grid step, padded to a multiple
    # of the sublane count.  Padded rows gather index 0 (always valid) and are
    # sliced off at the end.
    tb = min(_round_up(B, _SUBLANE), max_block_b)
    Bp = _round_up(B, tb)
    t_p = jnp.pad(t.astype(jnp.int32), (0, Bp - B))

    grid_spec = pltpu.PrefetchScalarGridSpec(
        num_scalar_prefetch=1,
        grid=(Bp // tb,),
        in_specs=[
            pl.BlockSpec((T_, d_model), lambda i, t_sm: (0, 0)),     # table
            pl.BlockSpec((d_model, dim_p), lambda i, t_sm: (0, 0)),  # w1
            pl.BlockSpec((1, dim_p), lambda i, t_sm: (0, 0)),        # b1
            pl.BlockSpec((dim_p, dim_p), lambda i, t_sm: (0, 0)),    # w2
            pl.BlockSpec((1, dim_p), lambda i, t_sm: (0, 0)),        # b2
        ],
        out_specs=pl.BlockSpec((tb, dim_p), lambda i, t_sm: (i, 0)),
        scratch_shapes=[pltpu.VMEM((tb, d_model), jnp.float32)],
    )

    out = pl.pallas_call(
        _time_embedding_kernel,
        out_shape=jax.ShapeDtypeStruct((Bp, dim_p), jnp.float32),
        grid_spec=grid_spec,
        compiler_params=pltpu.CompilerParams(
            dimension_semantics=("parallel",)),
    )(t_p, emb_table, w1p, b1p, w2p, b2p)

    return out[:B, :dim]


# -----------------------------------------------------------------------------
# Parameter construction (deterministic, mirrors the PyTorch __init__)
# -----------------------------------------------------------------------------
def make_sinusoidal_table(T, d_model):
    assert d_model % 2 == 0
    emb = jnp.arange(0, d_model, 2, dtype=jnp.float32) / d_model * math.log(10000.0)
    emb = jnp.exp(-emb)                                     # (d_model/2,)
    pos = jnp.arange(T, dtype=jnp.float32)                  # (T,)
    emb = pos[:, None] * emb[None, :]                       # (T, d_model/2)
    emb = jnp.stack([jnp.sin(emb), jnp.cos(emb)], axis=-1)  # (T, d_model/2, 2)
    return emb.reshape(T, d_model)                          # interleaved sin/cos


def xavier_uniform(key, fan_in, fan_out):
    # torch.nn.init.xavier_uniform_ on a (out, in) weight; returned in the
    # transposed (in, out) layout used by the kernel.
    bound = math.sqrt(6.0 / (fan_in + fan_out))
    return jax.random.uniform(key, (fan_in, fan_out), jnp.float32,
                              minval=-bound, maxval=bound)


def init_time_embedding_params(key, d_model, dim):
    k1, k2 = jax.random.split(key)
    w1 = xavier_uniform(k1, d_model, dim)                   # (d_model, dim)
    b1 = jnp.zeros((1, dim), jnp.float32)
    w2 = xavier_uniform(k2, dim, dim)                       # (dim, dim)
    b2 = jnp.zeros((1, dim), jnp.float32)
    return w1, b1, w2, b2


# -----------------------------------------------------------------------------
# Reference (pure JAX) for a sanity check
# -----------------------------------------------------------------------------
def time_embedding_ref(t, emb_table, params):
    w1, b1, w2, b2 = params
    x = emb_table[t]
    h = x @ w1 + b1
    h = h * jax.nn.sigmoid(h)
    return h @ w2 + b2


if __name__ == "__main__":
    d_model = 32
    dim = 64
    B = 8

    key = jax.random.PRNGKey(0)
    k_param, k_t = jax.random.split(key)

    emb_table = make_sinusoidal_table(T, d_model)           # (1000, 32)
    params = init_time_embedding_params(k_param, d_model, dim)

    t = jax.random.randint(k_t, (B,), 0, T, dtype=jnp.int32)

    out = time_embedding_forward(t, emb_table, params)
    out = jax.block_until_ready(out)

    ref = time_embedding_ref(t, emb_table, params)
    assert out.shape == (B, dim)
    assert jnp.allclose(out, ref, atol=1e-5, rtol=1e-5)

    print("KERNEL_OK")
</pallas_src>

<mosaic_0001>
module attributes {stable_mosaic.version = 11 : i64} {
  func.func @_time_embedding_kernel(%arg0: i32, %arg1: memref<8xi32, #tpu.memory_space<smem>>, %arg2: memref<1000x32xf32, #tpu.memory_space<vmem>>, %arg3: memref<32x128xf32, #tpu.memory_space<vmem>>, %arg4: memref<1x128xf32, #tpu.memory_space<vmem>>, %arg5: memref<128x128xf32, #tpu.memory_space<vmem>>, %arg6: memref<1x128xf32, #tpu.memory_space<vmem>>, %arg7: memref<8x128xf32, #tpu.memory_space<vmem>>, %arg8: memref<8x32xf32, #tpu.memory_space<vmem>>) attributes {dimension_semantics = [#tpu.dimension_semantics<parallel>], iteration_bounds = array<i64: 1>, scalar_prefetch = 1 : i64, scratch_operands = 1 : i64, tpu.core_type = #tpu.core_type<tc>, window_params = [{pipeline_mode = #tpu.pipeline_mode<synchronous>, transform_indices = @transform_0, window_bounds = array<i64: 1000, 32>}, {pipeline_mode = #tpu.pipeline_mode<synchronous>, transform_indices = @transform_1, window_bounds = array<i64: 32, 128>}, {pipeline_mode = #tpu.pipeline_mode<synchronous>, transform_indices = @transform_2, window_bounds = array<i64: 1, 128>}, {pipeline_mode = #tpu.pipeline_mode<synchronous>, transform_indices = @transform_3, window_bounds = array<i64: 128, 128>}, {pipeline_mode = #tpu.pipeline_mode<synchronous>, transform_indices = @transform_4, window_bounds = array<i64: 1, 128>}, {transform_indices = @transform_5, window_bounds = array<i64: 8, 128>}]} {
    %c8_i32 = arith.constant 8 : i32
    %0 = arith.muli %arg0, %c8_i32 : i32
    %c0_i32 = arith.constant 0 : i32
    %1 = arith.addi %0, %c0_i32 : i32
    %2 = arith.index_cast %1 : i32 to index
    %3 = memref.load %arg1[%2] : memref<8xi32, #tpu.memory_space<smem>>
    %4 = arith.index_cast %3 : i32 to index
    %c0 = arith.constant 0 : index
    %5 = vector.load %arg2[%4, %c0] : memref<1000x32xf32, #tpu.memory_space<vmem>>, vector<1x32xf32>
    %c0_0 = arith.constant 0 : index
    %c0_1 = arith.constant 0 : index
    %6 = vector.load %arg8[%c0_0, %c0_1] : memref<8x32xf32, #tpu.memory_space<vmem>>, vector<1x32xf32>
    tpu.vector_store %arg8[%c0_0, %c0_1], %5 {strides = array<i32>} : memref<8x32xf32, #tpu.memory_space<vmem>>, vector<1x32xf32>,
    %c8_i32_2 = arith.constant 8 : i32
    %7 = arith.muli %arg0, %c8_i32_2 : i32
    %c1_i32 = arith.constant 1 : i32
    %8 = arith.addi %7, %c1_i32 : i32
    %9 = arith.index_cast %8 : i32 to index
    %10 = memref.load %arg1[%9] : memref<8xi32, #tpu.memory_space<smem>>
    %11 = arith.index_cast %10 : i32 to index
    %c0_3 = arith.constant 0 : index
    %12 = vector.load %arg2[%11, %c0_3] : memref<1000x32xf32, #tpu.memory_space<vmem>>, vector<1x32xf32>
    %c1 = arith.constant 1 : index
    %c0_4 = arith.constant 0 : index
    %13 = vector.load %arg8[%c1, %c0_4] : memref<8x32xf32, #tpu.memory_space<vmem>>, vector<1x32xf32>
    tpu.vector_store %arg8[%c1, %c0_4], %12 {strides = array<i32>} : memref<8x32xf32, #tpu.memory_space<vmem>>, vector<1x32xf32>,
    %c8_i32_5 = arith.constant 8 : i32
    %14 = arith.muli %arg0, %c8_i32_5 : i32
    %c2_i32 = arith.constant 2 : i32
    %15 = arith.addi %14, %c2_i32 : i32
    %16 = arith.index_cast %15 : i32 to index
    %17 = memref.load %arg1[%16] : memref<8xi32, #tpu.memory_space<smem>>
    %18 = arith.index_cast %17 : i32 to index
    %c0_6 = arith.constant 0 : index
    %19 = vector.load %arg2[%18, %c0_6] : memref<1000x32xf32, #tpu.memory_space<vmem>>, vector<1x32xf32>
    %c2 = arith.constant 2 : index
    %c0_7 = arith.constant 0 : index
    %20 = vector.load %arg8[%c2, %c0_7] : memref<8x32xf32, #tpu.memory_space<vmem>>, vector<1x32xf32>
    tpu.vector_store %arg8[%c2, %c0_7], %19 {strides = array<i32>} : memref<8x32xf32, #tpu.memory_space<vmem>>, vector<1x32xf32>,
    %c8_i32_8 = arith.constant 8 : i32
    %21 = arith.muli %arg0, %c8_i32_8 : i32
    %c3_i32 = arith.constant 3 : i32
    %22 = arith.addi %21, %c3_i32 : i32
    %23 = arith.index_cast %22 : i32 to index
    %24 = memref.load %arg1[%23] : memref<8xi32, #tpu.memory_space<smem>>
    %25 = arith.index_cast %24 : i32 to index
    %c0_9 = arith.constant 0 : index
    %26 = vector.load %arg2[%25, %c0_9] : memref<1000x32xf32, #tpu.memory_space<vmem>>, vector<1x32xf32>
    %c3 = arith.constant 3 : index
    %c0_10 = arith.constant 0 : index
    %27 = vector.load %arg8[%c3, %c0_10] : memref<8x32xf32, #tpu.memory_space<vmem>>, vector<1x32xf32>
    tpu.vector_store %arg8[%c3, %c0_10], %26 {strides = array<i32>} : memref<8x32xf32, #tpu.memory_space<vmem>>, vector<1x32xf32>,
    %c8_i32_11 = arith.constant 8 : i32
    %28 = arith.muli %arg0, %c8_i32_11 : i32
    %c4_i32 = arith.constant 4 : i32
    %29 = arith.addi %28, %c4_i32 : i32
    %30 = arith.index_cast %29 : i32 to index
    %31 = memref.load %arg1[%30] : memref<8xi32, #tpu.memory_space<smem>>
    %32 = arith.index_cast %31 : i32 to index
    %c0_12 = arith.constant 0 : index
    %33 = vector.load %arg2[%32, %c0_12] : memref<1000x32xf32, #tpu.memory_space<vmem>>, vector<1x32xf32>
    %c4 = arith.constant 4 : index
    %c0_13 = arith.constant 0 : index
    %34 = vector.load %arg8[%c4, %c0_13] : memref<8x32xf32, #tpu.memory_space<vmem>>, vector<1x32xf32>
    tpu.vector_store %arg8[%c4, %c0_13], %33 {strides = array<i32>} : memref<8x32xf32, #tpu.memory_space<vmem>>, vector<1x32xf32>,
    %c8_i32_14 = arith.constant 8 : i32
    %35 = arith.muli %arg0, %c8_i32_14 : i32
    %c5_i32 = arith.constant 5 : i32
    %36 = arith.addi %35, %c5_i32 : i32
    %37 = arith.index_cast %36 : i32 to index
    %38 = memref.load %arg1[%37] : memref<8xi32, #tpu.memory_space<smem>>
    %39 = arith.index_cast %38 : i32 to index
    %c0_15 = arith.constant 0 : index
    %40 = vector.load %arg2[%39, %c0_15] : memref<1000x32xf32, #tpu.memory_space<vmem>>, vector<1x32xf32>
    %c5 = arith.constant 5 : index
    %c0_16 = arith.constant 0 : index
    %41 = vector.load %arg8[%c5, %c0_16] : memref<8x32xf32, #tpu.memory_space<vmem>>, vector<1x32xf32>
    tpu.vector_store %arg8[%c5, %c0_16], %40 {strides = array<i32>} : memref<8x32xf32, #tpu.memory_space<vmem>>, vector<1x32xf32>,
    %c8_i32_17 = arith.constant 8 : i32
    %42 = arith.muli %arg0, %c8_i32_17 : i32
    %c6_i32 = arith.constant 6 : i32
    %43 = arith.addi %42, %c6_i32 : i32
    %44 = arith.index_cast %43 : i32 to index
    %45 = memref.load %arg1[%44] : memref<8xi32, #tpu.memory_space<smem>>
    %46 = arith.index_cast %45 : i32 to index
    %c0_18 = arith.constant 0 : index
    %47 = vector.load %arg2[%46, %c0_18] : memref<1000x32xf32, #tpu.memory_space<vmem>>, vector<1x32xf32>
    %c6 = arith.constant 6 : index
    %c0_19 = arith.constant 0 : index
    %48 = vector.load %arg8[%c6, %c0_19] : memref<8x32xf32, #tpu.memory_space<vmem>>, vector<1x32xf32>
    tpu.vector_store %arg8[%c6, %c0_19], %47 {strides = array<i32>} : memref<8x32xf32, #tpu.memory_space<vmem>>, vector<1x32xf32>,
    %c8_i32_20 = arith.constant 8 : i32
    %49 = arith.muli %arg0, %c8_i32_20 : i32
    %c7_i32 = arith.constant 7 : i32
    %50 = arith.addi %49, %c7_i32 : i32
    %51 = arith.index_cast %50 : i32 to index
    %52 = memref.load %arg1[%51] : memref<8xi32, #tpu.memory_space<smem>>
    %53 = arith.index_cast %52 : i32 to index
    %c0_21 = arith.constant 0 : index
    %54 = vector.load %arg2[%53, %c0_21] : memref<1000x32xf32, #tpu.memory_space<vmem>>, vector<1x32xf32>
    %c7 = arith.constant 7 : index
    %c0_22 = arith.constant 0 : index
    %55 = vector.load %arg8[%c7, %c0_22] : memref<8x32xf32, #tpu.memory_space<vmem>>, vector<1x32xf32>
    tpu.vector_store %arg8[%c7, %c0_22], %54 {strides = array<i32>} : memref<8x32xf32, #tpu.memory_space<vmem>>, vector<1x32xf32>,
    %c0_23 = arith.constant 0 : index
    %c0_24 = arith.constant 0 : index
    %56 = vector.load %arg8[%c0_23, %c0_24] : memref<8x32xf32, #tpu.memory_space<vmem>>, vector<8x32xf32>
    %c0_25 = arith.constant 0 : index
    %c0_26 = arith.constant 0 : index
    %57 = vector.load %arg3[%c0_25, %c0_26] : memref<32x128xf32, #tpu.memory_space<vmem>>, vector<32x128xf32>
    %cst = arith.constant dense<0.000000e+00> : vector<8x128xf32>
    %58 = tpu.matmul %56, %57, %cst {dimension_numbers = #tpu.dot_dimension_numbers<[1], [0], [0], [1], [0, 0, 1, 1], [], []>} : vector<8x32xf32>, vector<32x128xf32>, vector<8x128xf32> -> vector<8x128xf32>
    %c0_27 = arith.constant 0 : index
    %c0_28 = arith.constant 0 : index
    %59 = vector.load %arg4[%c0_27, %c0_28] : memref<1x128xf32, #tpu.memory_space<vmem>>, vector<1x128xf32>
    %60 = vector.broadcast %59 : vector<1x128xf32> to vector<8x128xf32>
    %61 = arith.addf %58, %60 : vector<8x128xf32>
    %62 = arith.negf %61 : vector<8x128xf32>
    %63 = math.exp %62 : vector<8x128xf32>
    %cst_29 = arith.constant 1.000000e+00 : f32
    %64 = vector.broadcast %cst_29 : f32 to vector<8x128xf32>
    %65 = arith.addf %64, %63 : vector<8x128xf32>
    %66 = arith.divf %64, %65 : vector<8x128xf32>
    %67 = arith.mulf %61, %66 : vector<8x128xf32>
    %c0_30 = arith.constant 0 : index
    %c0_31 = arith.constant 0 : index
    %68 = vector.load %arg5[%c0_30, %c0_31] : memref<128x128xf32, #tpu.memory_space<vmem>>, vector<128x128xf32>
    %cst_32 = arith.constant dense<0.000000e+00> : vector<8x128xf32>
    %69 = tpu.matmul %67, %68, %cst_32 {dimension_numbers = #tpu.dot_dimension_numbers<[1], [0], [0], [1], [0, 0, 1, 1], [], []>} : vector<8x128xf32>, vector<128x128xf32>, vector<8x128xf32> -> vector<8x128xf32>
    %c0_33 = arith.constant 0 : index
    %c0_34 = arith.constant 0 : index
    %70 = vector.load %arg6[%c0_33, %c0_34] : memref<1x128xf32, #tpu.memory_space<vmem>>, vector<1x128xf32>
    %71 = vector.broadcast %70 : vector<1x128xf32> to vector<8x128xf32>
    %72 = arith.addf %69, %71 : vector<8x128xf32>
    %c0_35 = arith.constant 0 : index
    %c0_36 = arith.constant 0 : index
    %73 = vector.load %arg7[%c0_35, %c0_36] : memref<8x128xf32, #tpu.memory_space<vmem>>, vector<8x128xf32>
    tpu.vector_store %arg7[%c0_35, %c0_36], %72 {strides = array<i32>} : memref<8x128xf32, #tpu.memory_space<vmem>>, vector<8x128xf32>,
    return
  }
  func.func @transform_0(%arg0: i32, %arg1: memref<8xi32, #tpu.memory_space<smem>>) -> (i32, i32) {
    %c0_i32 = arith.constant 0 : i32
    %c0_i32_0 = arith.constant 0 : i32
    %c0_i32_1 = arith.constant 0 : i32
    return %c0_i32, %c0_i32_0 : i32, i32
  }
  func.func @transform_1(%arg0: i32, %arg1: memref<8xi32, #tpu.memory_space<smem>>) -> (i32, i32) {
    %c0_i32 = arith.constant 0 : i32
    %c0_i32_0 = arith.constant 0 : i32
    %c0_i32_1 = arith.constant 0 : i32
    return %c0_i32, %c0_i32_0 : i32, i32
  }
  func.func @transform_2(%arg0: i32, %arg1: memref<8xi32, #tpu.memory_space<smem>>) -> (i32, i32) {
    %c0_i32 = arith.constant 0 : i32
    %c0_i32_0 = arith.constant 0 : i32
    %c0_i32_1 = arith.constant 0 : i32
    return %c0_i32, %c0_i32_0 : i32, i32
  }
  func.func @transform_3(%arg0: i32, %arg1: memref<8xi32, #tpu.memory_space<smem>>) -> (i32, i32) {
    %c0_i32 = arith.constant 0 : i32
    %c0_i32_0 = arith.constant 0 : i32
    %c0_i32_1 = arith.constant 0 : i32
    return %c0_i32, %c0_i32_0 : i32, i32
  }
  func.func @transform_4(%arg0: i32, %arg1: memref<8xi32, #tpu.memory_space<smem>>) -> (i32, i32) {
    %c0_i32 = arith.constant 0 : i32
    %c0_i32_0 = arith.constant 0 : i32
    %c0_i32_1 = arith.constant 0 : i32
    return %c0_i32, %c0_i32_0 : i32, i32
  }
  func.func @transform_5(%arg0: i32, %arg1: memref<8xi32, #tpu.memory_space<smem>>) -> (i32, i32) {
    %c0_i32 = arith.constant 0 : i32
    %c0_i32_0 = arith.constant 0 : i32
    return %arg0, %c0_i32 : i32, i32
  }
}

</mosaic_0001>

<llo_original>
// kernel: tpu_custom_call.1
$region0: #{tpu_custom_call.1}
  #allocation0 [shape = 'u32[]', space=smem, size = 0x4, offset = 0x4, fixed_abs, tag = 'smem constant byte address 0x4 - core index']
  #allocation1 [shape = 'u32[144,128]{1,0:T(1,128)}', space=vmem, size = 0x12000, scoped, tag = 'internal scratch']
  #allocation2 [shape = 'f32[8,32]{1,0:T(8,128)}', space=vmem, size = 0x1000, scoped, tag = 'scratch operand']
  #allocation3 [shape = 's32[1]{0}', space=sflag, size = 0x4, scoped, tag = 'scoped memory for tpu_custom_call.1']
  #allocation4 [shape = 'u8[512]{0}', space=smem, size = 0x200, scoped, tag = 'prefetched SMEM operand 0']
  %s0 = inlined_call_operand.vmem [shape: s32[8], index: 0, kind: input, shape index: {}]
  %s1 = inlined_call_operand.vmem [shape: f32[1000,32], index: 1, kind: input, shape index: {}]
  %s2 = inlined_call_operand.vmem [shape: f32[32,128], index: 2, kind: input, shape index: {}]
  %s3 = inlined_call_operand.vmem [shape: f32[1,128], index: 3, kind: input, shape index: {}]
  %s4 = inlined_call_operand.vmem [shape: f32[128,128], index: 4, kind: input, shape index: {}]
  %s5 = inlined_call_operand.vmem [shape: f32[1,128], index: 5, kind: input, shape index: {}]
  %s6 = inlined_call_operand.hbm [shape: f32[8,128], index: 6, kind: output, shape index: {}]
  %s7 = sld [smem:[#allocation0]]
  $region30: #{tpu_custom_call.1} parent=0
    _
  %s9 = ssub.s32 1, %s7
  %s10 = scalar_select 0, %s9, %s7
  %s11 = sshll.u32 %s0, 4
  %s12 = int_to_ptr.vmem [resolvable:$true] %s11
  %14 = dma.vmem_to_smem %s12, 16, [#allocation4], [#allocation3]
  %15 = dma.done [#allocation3], 16
  %16 = sfence
  $region1: #{tpu_custom_call.1} parent=0
    #allocation5 [shape = 'u8[4096]{0}', space=vmem, size = 0x1000, scoped, tag = 'output window, operand 0, single buffered']
    #allocation6 [shape = 's32[1]{0}', space=sflag, size = 0x4, scoped, tag = 'scoped memory for tpu_custom_call.1']
    %17 = vsyncpa [#allocation6], 0
    // Predicated region
    $region2: #{tpu_custom_call.1} parent=1 // pred_check
      _
    $region3: #{tpu_custom_call.1} parent=1 // pred_check_branch
      %19 = sbr.rel (0) target = $region5
    $region4: #{tpu_custom_call.1} parent=1 // pred_region
      _
    $region5: #{tpu_custom_call.1} parent=1 // pred_fallthru
      _
    // Predicated region
    $region6: #{tpu_custom_call.1} parent=1 // pred_check
      _
    $region7: #{tpu_custom_call.1} parent=1 // pred_check_branch
      %21 = sbr.rel (0) target = $region9
    $region8: #{tpu_custom_call.1} parent=1 // pred_region
      _
    $region9: #{tpu_custom_call.1} parent=1 // pred_fallthru
      _
    // Predicated region
    $region10: #{tpu_custom_call.1} parent=1 // pred_check
      _
    $region11: #{tpu_custom_call.1} parent=1 // pred_check_branch
      %23 = sbr.rel (0) target = $region13
    $region12: #{tpu_custom_call.1} parent=1 // pred_region
      _
    $region13: #{tpu_custom_call.1} parent=1 // pred_fallthru
      _
    // Predicated region
    $region14: #{tpu_custom_call.1} parent=1 // pred_check
      _
    $region15: #{tpu_custom_call.1} parent=1 // pred_check_branch
      %25 = sbr.rel (0) target = $region17
    $region16: #{tpu_custom_call.1} parent=1 // pred_region
      _
    $region17: #{tpu_custom_call.1} parent=1 // pred_fallthru
      _
    // Predicated region
    $region18: #{tpu_custom_call.1} parent=1 // pred_check
      _
    $region19: #{tpu_custom_call.1} parent=1 // pred_check_branch
      %27 = sbr.rel (0) target = $region21
    $region20: #{tpu_custom_call.1} parent=1 // pred_region
      _
    $region21: #{tpu_custom_call.1} parent=1 // pred_fallthru
      _
    %s28 = smul.u32 0, 8
    %s29 = sld [smem:[#allocation4 + %s28]]
    %s30 = scalar_lea.vmem %s1, %s29
    %v31 = vld [vmem:[%s30] sm:$0x1]
    %vm32 = vcmask 253952
    %33 = vst.msk [vmem:[#allocation2] sm:$0x1] %vm32, %v31
    %s34 = sadd.s32 %s28, 1
    %s35 = sld [smem:[#allocation4 + %s34]]
    %s36 = scalar_lea.vmem %s1, %s35
    %v37 = vld [vmem:[%s36] sm:$0x1]
    %38 = vst.msk [vmem:[#allocation2 + $0x1] sm:$0x1] %vm32, %v37
    %s39 = sadd.s32 %s28, 2
    %s40 = sld [smem:[#allocation4 + %s39]]
    %s41 = scalar_lea.vmem %s1, %s40
    %v42 = vld [vmem:[%s41] sm:$0x1]
    %43 = vst.msk [vmem:[#allocation2 + $0x2] sm:$0x1] %vm32, %v42
    %s44 = sadd.s32 %s28, 3
    %s45 = sld [smem:[#allocation4 + %s44]]
    %s46 = scalar_lea.vmem %s1, %s45
    %v47 = vld [vmem:[%s46] sm:$0x1]
    %48 = vst.msk [vmem:[#allocation2 + $0x3] sm:$0x1] %vm32, %v47
    %s49 = sadd.s32 %s28, 4
    %s50 = sld [smem:[#allocation4 + %s49]]
    %s51 = scalar_lea.vmem %s1, %s50
    %v52 = vld [vmem:[%s51] sm:$0x1]
    %53 = vst.msk [vmem:[#allocation2 + $0x4] sm:$0x1] %vm32, %v52
    %s54 = sadd.s32 %s28, 5
    %s55 = sld [smem:[#allocation4 + %s54]]
    %s56 = scalar_lea.vmem %s1, %s55
    %v57 = vld [vmem:[%s56] sm:$0x1]
    %58 = vst.msk [vmem:[#allocation2 + $0x5] sm:$0x1] %vm32, %v57
    %s59 = sadd.s32 %s28, 6
    %s60 = sld [smem:[#allocation4 + %s59]]
    %s61 = scalar_lea.vmem %s1, %s60
    %v62 = vld [vmem:[%s61] sm:$0x1]
    %63 = vst.msk [vmem:[#allocation2 + $0x6] sm:$0x1] %vm32, %v62
    %s64 = sadd.s32 %s28, 7
    %s65 = sld [smem:[#allocation4 + %s64]]
    %s66 = scalar_lea.vmem %s1, %s65
    %v67 = vld [vmem:[%s66] sm:$0x1]
    %68 = vst.msk [vmem:[#allocation2 + $0x7] sm:$0x1] %vm32, %v67
    %v69 = vld [vmem:[#allocation2] sm:$0xff]
    %v70 = vld [vmem:[%s2] sm:$0xff]
    %v71 = vld [vmem:[%s2 + $0x8] sm:$0xff]
    %v72 = vld [vmem:[%s2 + $0x10] sm:$0xff]
    %v73 = vld [vmem:[%s2 + $0x18] sm:$0xff]
    %v74 = vld [vmem:[%s3] sm:$0x1]
    %v76 = vlaneseq
    %v77 = vshrl.u32 %v76, 7
    %v78 = vsub.s32 0, %v77
    %v79 = vrot.slane %v74, %v78
    %vm81 = vcmask 261120
    %v83 = vsel %vm81, %v69, 0
    %85 = vmatprep.subr.mxu0 0.0
    %86 = vmatpush1.msra.mxu0 %v70
    %87 = vmatprep.subr.mxu0 0.0
    %88 = vmatpush1.msra.mxu0 %v71
    %89 = vmatprep.subr.mxu0 0.0
    %90 = vmatpush1.msra.mxu0 %v72
    %91 = vmatprep.subr.mxu0 0.0
    %92 = vmatpush1.msra.mxu0 %v73
    %93 = vmatprep.subr.mxu0 0.0
    %94 = vmatpush1.msra.mxu0 0.0
    %95 = vmatprep.subr.mxu0 0.0
    %96 = vmatpush1.msra.mxu0 0.0
    %97 = vmatprep.subr.mxu0 0.0
    %98 = vmatpush1.msra.mxu0 0.0
    %99 = vmatprep.subr.mxu0 0.0
    %100 = vmatpush1.msra.mxu0 0.0
    %101 = vmatprep.subr.mxu0 0.0
    %102 = vmatpush1.msra.mxu0 0.0
    %103 = vmatprep.subr.mxu0 0.0
    %104 = vmatpush1.msra.mxu0 0.0
    %105 = vmatprep.subr.mxu0 0.0
    %106 = vmatpush1.msra.mxu0 0.0
    %107 = vmatprep.subr.mxu0 0.0
    %108 = vmatpush1.msra.mxu0 0.0
    %109 = vmatprep.subr.mxu0 0.0
    %110 = vmatpush1.msra.mxu0 0.0
    %111 = vmatprep.subr.mxu0 0.0
    %112 = vmatpush1.msra.mxu0 0.0
    %113 = vmatprep.subr.mxu0 0.0
    %114 = vmatpush1.msra.mxu0 0.0
    %115 = vmatprep.subr.mxu0 0.0
    %116 = vmatpush1.msra.mxu0 0.0
    %117 = vmatprep.subr.mxu0 0.0
    %118 = vmatpush1.msra.mxu0 0.0
    %119 = vmatprep.subr.mxu0 0.0
    %120 = vmatpush1.msra.mxu0 0.0
    %121 = vmatprep.subr.mxu0 0.0
    %122 = vmatpush1.msra.mxu0 0.0
    %123 = vmatprep.subr.mxu0 0.0
    %124 = vmatpush1.msra.mxu0 0.0
    %125 = vmatprep.subr.mxu0 0.0
    %126 = vmatpush1.msra.mxu0 0.0
    %127 = vmatprep.subr.mxu0 0.0
    %128 = vmatpush1.msra.mxu0 0.0
    %129 = vmatprep.subr.mxu0 0.0
    %130 = vmatpush1.msra.mxu0 0.0
    %131 = vmatprep.subr.mxu0 0.0
    %132 = vmatpush1.msra.mxu0 0.0
    %133 = vmatprep.subr.mxu0 0.0
    %134 = vmatpush1.msra.mxu0 0.0
    %135 = vmatprep.subr.mxu0 0.0
    %136 = vmatpush1.msra.mxu0 0.0
    %137 = vmatprep.subr.mxu0 0.0
    %138 = vmatpush1.msra.mxu0 0.0
    %139 = vmatprep.subr.mxu0 0.0
    %140 = vmatpush1.msra.mxu0 0.0
    %141 = vmatprep.subr.mxu0 0.0
    %142 = vmatpush1.msra.mxu0 0.0
    %143 = vmatprep.subr.mxu0 0.0
    %144 = vmatpush1.msra.mxu0 0.0
    %145 = vmatprep.subr.mxu0 0.0
    %146 = vmatpush1.msra.mxu0 0.0
    %147 = vmatprep.subr.mxu0 0.0
    %148 = vmatpush1.msra.mxu0 0.0
    %149 = vmatprep.mubr.f32.mxu0 0.0
    %150 = vmatmul.mubr.f32.gmra.mrb[0].mxu0 %v83
    %v151 = vpop.f32.mrb[0].mxu0
    %v152 = vadd.f32 %v79, %v151
    %v153 = vpop.f32.mrb[0].mxu0
    %154 = vdwg.mxu0
    %v155 = vxor.u32 %v152, 2147483648
    %v156 = vmul.f32 %v155, 1.442695
    %v157 = vpow.pop %v156
    %v158 = vadd.f32 %v157, 1.0
    %v159 = vrcp.pop %v158
    %v160 = vmul.f32 1.0, %v159
    %v161 = vmul.f32 %v152, %v160
    %v162 = vld [vmem:[%s4] sm:$0xff]
    %v163 = vld [vmem:[%s4 + $0x8] sm:$0xff]
    %v164 = vld [vmem:[%s4 + $0x10] sm:$0xff]
    %v165 = vld [vmem:[%s4 + $0x18] sm:$0xff]
    %v166 = vld [vmem:[%s4 + $0x20] sm:$0xff]
    %v167 = vld [vmem:[%s4 + $0x28] sm:$0xff]
    %v168 = vld [vmem:[%s4 + $0x30] sm:$0xff]
    %v169 = vld [vmem:[%s4 + $0x38] sm:$0xff]
    %v170 = vld [vmem:[%s4 + $0x40] sm:$0xff]
    %v171 = vld [vmem:[%s4 + $0x48] sm:$0xff]
    %v172 = vld [vmem:[%s4 + $0x50] sm:$0xff]
    %v173 = vld [vmem:[%s4 + $0x58] sm:$0xff]
    %v174 = vld [vmem:[%s4 + $0x60] sm:$0xff]
    %v175 = vld [vmem:[%s4 + $0x68] sm:$0xff]
    %v176 = vld [vmem:[%s4 + $0x70] sm:$0xff]
    %v177 = vld [vmem:[%s4 + $0x78] sm:$0xff]
    %v178 = vld [vmem:[%s5] sm:$0x1]
    %v180 = vlaneseq
    %v181 = vshrl.u32 %v180, 7
    %v182 = vsub.s32 0, %v181
    %v183 = vrot.slane %v178, %v182
    %185 = vmatprep.subr.mxu0 0.0
    %186 = vmatpush1.msra.mxu0 %v162
    %187 = vmatprep.subr.mxu0 0.0
    %188 = vmatpush1.msra.mxu0 %v163
    %189 = vmatprep.subr.mxu0 0.0
    %190 = vmatpush1.msra.mxu0 %v164
    %191 = vmatprep.subr.mxu0 0.0
    %192 = vmatpush1.msra.mxu0 %v165
    %193 = vmatprep.subr.mxu0 0.0
    %194 = vmatpush1.msra.mxu0 %v166
    %195 = vmatprep.subr.mxu0 0.0
    %196 = vmatpush1.msra.mxu0 %v167
    %197 = vmatprep.subr.mxu0 0.0
    %198 = vmatpush1.msra.mxu0 %v168
    %199 = vmatprep.subr.mxu0 0.0
    %200 = vmatpush1.msra.mxu0 %v169
    %201 = vmatprep.subr.mxu0 0.0
    %202 = vmatpush1.msra.mxu0 %v170
    %203 = vmatprep.subr.mxu0 0.0
    %204 = vmatpush1.msra.mxu0 %v171
    %205 = vmatprep.subr.mxu0 0.0
    %206 = vmatpush1.msra.mxu0 %v172
    %207 = vmatprep.subr.mxu0 0.0
    %208 = vmatpush1.msra.mxu0 %v173
    %209 = vmatprep.subr.mxu0 0.0
    %210 = vmatpush1.msra.mxu0 %v174
    %211 = vmatprep.subr.mxu0 0.0
    %212 = vmatpush1.msra.mxu0 %v175
    %213 = vmatprep.subr.mxu0 0.0
    %214 = vmatpush1.msra.mxu0 %v176
    %215 = vmatprep.subr.mxu0 0.0
    %216 = vmatpush1.msra.mxu0 %v177
    %217 = vmatprep.subr.mxu0 0.0
    %218 = vmatpush1.msra.mxu0 0.0
    %219 = vmatprep.subr.mxu0 0.0
    %220 = vmatpush1.msra.mxu0 0.0
    %221 = vmatprep.subr.mxu0 0.0
    %222 = vmatpush1.msra.mxu0 0.0
    %223 = vmatprep.subr.mxu0 0.0
    %224 = vmatpush1.msra.mxu0 0.0
    %225 = vmatprep.subr.mxu0 0.0
    %226 = vmatpush1.msra.mxu0 0.0
    %227 = vmatprep.subr.mxu0 0.0
    %228 = vmatpush1.msra.mxu0 0.0
    %229 = vmatprep.subr.mxu0 0.0
    %230 = vmatpush1.msra.mxu0 0.0
    %231 = vmatprep.subr.mxu0 0.0
    %232 = vmatpush1.msra.mxu0 0.0
    %233 = vmatprep.subr.mxu0 0.0
    %234 = vmatpush1.msra.mxu0 0.0
    %235 = vmatprep.subr.mxu0 0.0
    %236 = vmatpush1.msra.mxu0 0.0
    %237 = vmatprep.subr.mxu0 0.0
    %238 = vmatpush1.msra.mxu0 0.0
    %239 = vmatprep.subr.mxu0 0.0
    %240 = vmatpush1.msra.mxu0 0.0
    %241 = vmatprep.subr.mxu0 0.0
    %242 = vmatpush1.msra.mxu0 0.0
    %243 = vmatprep.subr.mxu0 0.0
    %244 = vmatpush1.msra.mxu0 0.0
    %245 = vmatprep.subr.mxu0 0.0
    %246 = vmatpush1.msra.mxu0 0.0
    %247 = vmatprep.subr.mxu0 0.0
    %248 = vmatpush1.msra.mxu0 0.0
    %249 = vmatprep.mubr.f32.mxu0 0.0
    %250 = vmatmul.mubr.f32.gmra.mrb[0].mxu0 %v161
    %v251 = vpop.f32.mrb[0].mxu0
    %v252 = vadd.f32 %v183, %v251
    %v253 = vpop.f32.mrb[0].mxu0
    %254 = vdwg.mxu0
    %255 = vst [vmem:[#allocation5] sm:$0xff] %v252
    // Predicated region
    $region22: #{tpu_custom_call.1} parent=1 // pred_check
      _
    $region23: #{tpu_custom_call.1} parent=1 // pred_check_branch
      %257 = sbr.rel (0) target = $region25
    $region24: #{tpu_custom_call.1} parent=1 // pred_region
      %s259 = ssub.s32 128, 128
      %260 = vsyncadd [#allocation6], %s259
      %s262 = sshll.u32 [#allocation5], 4
      %s263 = int_to_ptr.vmem [resolvable:$true] %s262
      %265 = dma.vmem_to_hbm [thread:$0]  %s263, 128, %s6, [#allocation6]
    $region25: #{tpu_custom_call.1} parent=1 // pred_fallthru
      _
    // Predicated region
    $region26: #{tpu_custom_call.1} parent=1 // pred_check
      _
    $region27: #{tpu_custom_call.1} parent=1 // pred_check_branch
      %267 = sbr.rel (0) target = $region29
    $region28: #{tpu_custom_call.1} parent=1 // pred_region
      %268 = dma.done [#allocation6], 128
    $region29: #{tpu_custom_call.1} parent=1 // pred_fallthru
      _
    %269 = vsyncpa [#allocation6], 1

</llo_original>
